<compile_context>
chip_gen: v7x
topology: tpu7x:2x2x1
jax: 0.10.0
libtpu: 0.0.40
codegen_flags: <defaults>
</compile_context>

<pallas_src>
import functools

import jax
import jax.numpy as jnp
from jax.experimental import pallas as pl
from jax.experimental.pallas import tpu as pltpu

SIGMA_MIN = -5.0
SIGMA_MAX = 2.0


def _round_up(x: int, m: int) -> int:
    return ((x + m - 1) // m) * m


# ----------------------------------------------------------------------------
# Kernel
# ----------------------------------------------------------------------------
def _actor_kernel(mu_width, with_logits, obs_ref, w1_ref, b1_ref, w2_ref,
                  b2_ref, wh_ref, bh_ref, *out_refs):
    mu_ref, sig_ref = out_refs[0], out_refs[1]

    # Backbone: two Linear+ReLU layers. bf16 MXU inputs, f32 accumulation,
    # f32 elementwise epilogue.
    x = obs_ref[...].astype(jnp.bfloat16)
    h1 = jnp.dot(x, w1_ref[...], preferred_element_type=jnp.float32)
    h1 = jnp.maximum(h1 + b1_ref[...], 0.0)
    h2 = jnp.dot(h1.astype(jnp.bfloat16), w2_ref[...],
                 preferred_element_type=jnp.float32)
    h2 = jnp.maximum(h2 + b2_ref[...], 0.0)

    # Fused dist-net heads: one matmul producing [mu | log_sigma]. Each half
    # is a multiple of 128 lanes wide, so the slices and stores below stay
    # lane-aligned (no masked partial stores, no iota/where select).
    head = jnp.dot(h2.astype(jnp.bfloat16), wh_ref[...],
                   preferred_element_type=jnp.float32) + bh_ref[...]
    mu_ref[...] = head[:, :mu_width]
    sig_ref[...] = jnp.exp(jnp.clip(head[:, mu_width:], SIGMA_MIN, SIGMA_MAX))

    if with_logits:
        out_refs[2][...] = h2


# ----------------------------------------------------------------------------
# Parameter preparation (call once): pad to lane-dense shapes, fuse heads,
# cast matmul weights to bf16 (biases stay f32).
# ----------------------------------------------------------------------------
def prepare_params(p):
    obs_dim, hidden = p["w1"].shape
    act_dim = p["w_mu"].shape[1]
    # TODO(synk): for large `hidden` on v6e/v7x, padding to multiples of 256
    # fills the 256-wide MXU better; 128 keeps the small test case cheap.
    hid_pad = _round_up(hidden, 128)
    pa = _round_up(act_dim, 128)

    def pad2(a, rows, cols):
        return jnp.pad(a, ((0, rows - a.shape[0]), (0, cols - a.shape[1])))

    def pad_bias(b, cols):
        return jnp.pad(b.reshape(1, -1), ((0, 0), (0, cols - b.shape[0])))

    w_head = jnp.concatenate(
        [pad2(p["w_mu"], hid_pad, pa), pad2(p["w_sigma"], hid_pad, pa)], axis=1)
    b_head = jnp.concatenate(
        [pad_bias(p["b_mu"], pa), pad_bias(p["b_sigma"], pa)], axis=1)

    return {
        "w1": pad2(p["w1"], obs_dim, hid_pad).astype(jnp.bfloat16),
        "b1": pad_bias(p["b1"], hid_pad).astype(jnp.float32),
        "w2": pad2(p["w2"], hid_pad, hid_pad).astype(jnp.bfloat16),
        "b2": pad_bias(p["b2"], hid_pad).astype(jnp.float32),
        "w_head": w_head.astype(jnp.bfloat16),
        "b_head": b_head.astype(jnp.float32),
    }


# ----------------------------------------------------------------------------
# Forward wrapper
# ----------------------------------------------------------------------------
@functools.partial(jax.jit,
                   static_argnames=("hidden", "act_dim", "tile_b",
                                    "return_logits"))
def actor_prob_forward(obs, params, *, hidden, act_dim, tile_b=1024,
                       return_logits=False):
    """Returns (mu, sigma) parameterizing the Normal; (+ logits if requested)."""
    obs = jnp.asarray(obs, jnp.float32)
    B, obs_dim = obs.shape
    hid_pad = params["w2"].shape[0]
    pa = params["w_head"].shape[1] // 2          # padded per-head width

    # --- batch tiling: balanced tiles (no padding cliff), >= 2 grid steps
    # when the batch allows it (both v7x TensorCores), VMEM-budget capped.
    n_target = max(pl.cdiv(B, tile_b), 2 if B >= 16 else 1)
    TB = _round_up(pl.cdiv(B, n_target), 8)

    def vmem_bytes(tb):
        weights = 2 * 2 * (obs_dim * hid_pad + hid_pad * hid_pad
                           + hid_pad * 2 * pa)                       # bf16, x2 buffers
        biases = 2 * 4 * 8 * (2 * hid_pad + 2 * pa)                  # f32, 8-sublane pad
        per_tile = 2 * 4 * tb * (obs_dim + 2 * pa
                                 + (hid_pad if return_logits else 0))  # f32 in/out, x2
        temps = 4 * tb * (2 * hid_pad + 2 * pa)                      # h1/h2/head live f32
        return weights + biases + per_tile + temps

    PIPELINE_BUDGET = 24 << 20   # comfortably inside v5e/v7x scoped VMEM
    while TB > 8 and vmem_bytes(TB) > PIPELINE_BUDGET:
        TB = max(8, _round_up(TB // 2, 8))

    B_pad = _round_up(B, TB)
    num_tiles = B_pad // TB
    obs_p = obs if B_pad == B else jnp.pad(obs, ((0, B_pad - B), (0, 0)))

    const = lambda i: (0, 0)      # weights/biases: DMA'd once, VMEM-resident
    tiled = lambda i: (i, 0)      # batch-tiled arrays

    in_specs = [
        pl.BlockSpec((TB, obs_dim), tiled),          # obs (f32; bf16 cast in-kernel)
        pl.BlockSpec((obs_dim, hid_pad), const),     # w1 (bf16)
        pl.BlockSpec((1, hid_pad), const),           # b1 (f32)
        pl.BlockSpec((hid_pad, hid_pad), const),     # w2 (bf16)
        pl.BlockSpec((1, hid_pad), const),           # b2 (f32)
        pl.BlockSpec((hid_pad, 2 * pa), const),      # w_head = [Wmu | Wsig] (bf16)
        pl.BlockSpec((1, 2 * pa), const),            # b_head (f32)
    ]
    out_specs = [pl.BlockSpec((TB, pa), tiled),      # mu    (lane-dense)
                 pl.BlockSpec((TB, pa), tiled)]      # sigma (lane-dense)
    out_shapes = [jax.ShapeDtypeStruct((B_pad, pa), jnp.float32),
                  jax.ShapeDtypeStruct((B_pad, pa), jnp.float32)]
    if return_logits:
        out_specs.append(pl.BlockSpec((TB, hid_pad), tiled))
        out_shapes.append(jax.ShapeDtypeStruct((B_pad, hid_pad), jnp.float32))

    flops = 2 * B_pad * hid_pad * (obs_dim + hid_pad + 2 * pa)
    bytes_accessed = (
        obs_p.size * 4
        + (params["w1"].size + params["w2"].size + params["w_head"].size) * 2
        + (params["b1"].size + params["b2"].size + params["b_head"].size) * 4
        + B_pad * 2 * pa * 4
        + (B_pad * hid_pad * 4 if return_logits else 0))
    cost = pl.CostEstimate(flops=flops, transcendentals=B_pad * pa,
                           bytes_accessed=bytes_accessed)

    vmem_limit = int(min(64 << 20, max(16 << 20, 2 * vmem_bytes(TB) + (4 << 20))))

    outs = pl.pallas_call(
        functools.partial(_actor_kernel, pa, return_logits),
        out_shape=tuple(out_shapes),
        grid=(num_tiles,),
        in_specs=in_specs,
        out_specs=tuple(out_specs),
        compiler_params=pltpu.CompilerParams(
            dimension_semantics=("parallel",),
            vmem_limit_bytes=vmem_limit),
        cost_estimate=cost,
    )(obs_p,
      params["w1"], params["b1"],
      params["w2"], params["b2"],
      params["w_head"], params["b_head"])

    mu = outs[0][:B, :act_dim]
    sigma = outs[1][:B, :act_dim]
    if return_logits:
        return mu, sigma, outs[2][:B, :hidden]
    return mu, sigma


# ----------------------------------------------------------------------------
# Logical ("torch state-dict"-like) parameter init + pure-JAX reference
# ----------------------------------------------------------------------------
def _init_params(key, obs_dim, hidden, act_dim):
    ks = jax.random.split(key, 8)

    def lin(k, fan_in, fan_out):
        s = 1.0 / jnp.sqrt(jnp.float32(fan_in))
        return jax.random.uniform(k, (fan_in, fan_out), jnp.float32, -s, s)

    def bias(k, n, s=0.1):
        return jax.random.uniform(k, (n,), jnp.float32, -s, s)

    return {
        "w1": lin(ks[0], obs_dim, hidden), "b1": bias(ks[1], hidden),
        "w2": lin(ks[2], hidden, hidden), "b2": bias(ks[3], hidden),
        "w_mu": lin(ks[4], hidden, act_dim), "b_mu": bias(ks[5], act_dim),
        "w_sigma": lin(ks[6], hidden, act_dim), "b_sigma": bias(ks[7], act_dim),
    }


def _reference(obs, p):
    bf = lambda a: a.astype(jnp.bfloat16)
    f32 = jnp.float32
    h1 = jnp.maximum(
        jnp.dot(bf(obs), bf(p["w1"]), preferred_element_type=f32) + p["b1"], 0.0)
    h2 = jnp.maximum(
        jnp.dot(bf(h1), bf(p["w2"]), preferred_element_type=f32) + p["b2"], 0.0)
    mu = jnp.dot(bf(h2), bf(p["w_mu"]), preferred_element_type=f32) + p["b_mu"]
    log_sigma = (jnp.dot(bf(h2), bf(p["w_sigma"]), preferred_element_type=f32)
                 + p["b_sigma"])
    sigma = jnp.exp(jnp.clip(log_sigma, SIGMA_MIN, SIGMA_MAX))
    return mu, sigma, h2


if __name__ == "__main__":
    key = jax.random.PRNGKey(0)
    k_obs, k_par = jax.random.split(key)

    batch, obs_dim, hidden, act_dim = 8, 16, 32, 4
    obs = jax.random.normal(k_obs, (batch, obs_dim), dtype=jnp.float32)
    raw = _init_params(k_par, obs_dim, hidden, act_dim)
    params = prepare_params(raw)          # one-time pad / fuse / bf16 cast

    # Default path (matches the module: only the Normal's parameters).
    mu, sigma = actor_prob_forward(obs, params, hidden=hidden, act_dim=act_dim)
    jax.block_until_ready((mu, sigma))

    # Debug path with the backbone logits writeback enabled.
    mu2, sigma2, logits = actor_prob_forward(
        obs, params, hidden=hidden, act_dim=act_dim, return_logits=True)
    jax.block_until_ready((mu2, sigma2, logits))

    mu_r, sigma_r, logits_r = _reference(obs, raw)
    assert mu.shape == (batch, act_dim) and sigma.shape == (batch, act_dim)
    assert logits.shape == (batch, hidden)
    assert jnp.allclose(mu, mu_r, atol=1e-4, rtol=1e-4)
    assert jnp.allclose(sigma, sigma_r, atol=1e-4, rtol=1e-4)
    assert jnp.allclose(mu2, mu_r, atol=1e-4, rtol=1e-4)
    assert jnp.allclose(sigma2, sigma_r, atol=1e-4, rtol=1e-4)
    assert jnp.allclose(logits, logits_r, atol=1e-4, rtol=1e-4)

    print("KERNEL_OK")
</pallas_src>

<mosaic_0001>
module attributes {stable_mosaic.version = 11 : i64} {
  func.func @_actor_kernel(%arg0: i32, %arg1: memref<8x16xf32, #tpu.memory_space<vmem>>, %arg2: memref<16x128xbf16, #tpu.memory_space<vmem>>, %arg3: memref<1x128xf32, #tpu.memory_space<vmem>>, %arg4: memref<128x128xbf16, #tpu.memory_space<vmem>>, %arg5: memref<1x128xf32, #tpu.memory_space<vmem>>, %arg6: memref<128x256xbf16, #tpu.memory_space<vmem>>, %arg7: memref<1x256xf32, #tpu.memory_space<vmem>>, %arg8: memref<8x128xf32, #tpu.memory_space<vmem>>, %arg9: memref<8x128xf32, #tpu.memory_space<vmem>>) attributes {dimension_semantics = [#tpu.dimension_semantics<parallel>], iteration_bounds = array<i64: 1>, scalar_prefetch = 0 : i64, scratch_operands = 0 : i64, tpu.core_type = #tpu.core_type<tc>, window_params = [{transform_indices = @transform_0, window_bounds = array<i64: 8, 16>}, {pipeline_mode = #tpu.pipeline_mode<synchronous>, transform_indices = @transform_1, window_bounds = array<i64: 16, 128>}, {pipeline_mode = #tpu.pipeline_mode<synchronous>, transform_indices = @transform_2, window_bounds = array<i64: 1, 128>}, {pipeline_mode = #tpu.pipeline_mode<synchronous>, transform_indices = @transform_3, window_bounds = array<i64: 128, 128>}, {pipeline_mode = #tpu.pipeline_mode<synchronous>, transform_indices = @transform_4, window_bounds = array<i64: 1, 128>}, {pipeline_mode = #tpu.pipeline_mode<synchronous>, transform_indices = @transform_5, window_bounds = array<i64: 128, 256>}, {pipeline_mode = #tpu.pipeline_mode<synchronous>, transform_indices = @transform_6, window_bounds = array<i64: 1, 256>}, {transform_indices = @transform_7, window_bounds = array<i64: 8, 128>}, {transform_indices = @transform_8, window_bounds = array<i64: 8, 128>}]} {
    %c0 = arith.constant 0 : index
    %c0_0 = arith.constant 0 : index
    %0 = vector.load %arg1[%c0, %c0_0] : memref<8x16xf32, #tpu.memory_space<vmem>>, vector<8x16xf32>
    %1 = arith.truncf %0 : vector<8x16xf32> to vector<8x16xbf16>
    %c0_1 = arith.constant 0 : index
    %c0_2 = arith.constant 0 : index
    %2 = vector.load %arg2[%c0_1, %c0_2] : memref<16x128xbf16, #tpu.memory_space<vmem>>, vector<16x128xbf16>
    %cst = arith.constant dense<0.000000e+00> : vector<8x128xf32>
    %3 = tpu.matmul %1, %2, %cst {dimension_numbers = #tpu.dot_dimension_numbers<[1], [0], [0], [1], [0, 0, 1, 1], [], []>} : vector<8x16xbf16>, vector<16x128xbf16>, vector<8x128xf32> -> vector<8x128xf32>
    %c0_3 = arith.constant 0 : index
    %c0_4 = arith.constant 0 : index
    %4 = vector.load %arg3[%c0_3, %c0_4] : memref<1x128xf32, #tpu.memory_space<vmem>>, vector<1x128xf32>
    %5 = vector.broadcast %4 : vector<1x128xf32> to vector<8x128xf32>
    %6 = arith.addf %3, %5 : vector<8x128xf32>
    %cst_5 = arith.constant 0.000000e+00 : f32
    %7 = vector.broadcast %cst_5 : f32 to vector<8x128xf32>
    %8 = arith.maximumf %6, %7 : vector<8x128xf32>
    %9 = arith.truncf %8 : vector<8x128xf32> to vector<8x128xbf16>
    %c0_6 = arith.constant 0 : index
    %c0_7 = arith.constant 0 : index
    %10 = vector.load %arg4[%c0_6, %c0_7] : memref<128x128xbf16, #tpu.memory_space<vmem>>, vector<128x128xbf16>
    %cst_8 = arith.constant dense<0.000000e+00> : vector<8x128xf32>
    %11 = tpu.matmul %9, %10, %cst_8 {dimension_numbers = #tpu.dot_dimension_numbers<[1], [0], [0], [1], [0, 0, 1, 1], [], []>} : vector<8x128xbf16>, vector<128x128xbf16>, vector<8x128xf32> -> vector<8x128xf32>
    %c0_9 = arith.constant 0 : index
    %c0_10 = arith.constant 0 : index
    %12 = vector.load %arg5[%c0_9, %c0_10] : memref<1x128xf32, #tpu.memory_space<vmem>>, vector<1x128xf32>
    %13 = vector.broadcast %12 : vector<1x128xf32> to vector<8x128xf32>
    %14 = arith.addf %11, %13 : vector<8x128xf32>
    %cst_11 = arith.constant 0.000000e+00 : f32
    %15 = vector.broadcast %cst_11 : f32 to vector<8x128xf32>
    %16 = arith.maximumf %14, %15 : vector<8x128xf32>
    %17 = arith.truncf %16 : vector<8x128xf32> to vector<8x128xbf16>
    %c0_12 = arith.constant 0 : index
    %c0_13 = arith.constant 0 : index
    %18 = vector.load %arg6[%c0_12, %c0_13] : memref<128x256xbf16, #tpu.memory_space<vmem>>, vector<128x256xbf16>
    %cst_14 = arith.constant dense<0.000000e+00> : vector<8x256xf32>
    %19 = tpu.matmul %17, %18, %cst_14 {dimension_numbers = #tpu.dot_dimension_numbers<[1], [0], [0], [1], [0, 0, 1, 1], [], []>} : vector<8x128xbf16>, vector<128x256xbf16>, vector<8x256xf32> -> vector<8x256xf32>
    %c0_15 = arith.constant 0 : index
    %c0_16 = arith.constant 0 : index
    %20 = vector.load %arg7[%c0_15, %c0_16] : memref<1x256xf32, #tpu.memory_space<vmem>>, vector<1x256xf32>
    %21 = vector.broadcast %20 : vector<1x256xf32> to vector<8x256xf32>
    %22 = arith.addf %19, %21 : vector<8x256xf32>
    %23 = vector.extract_strided_slice %22 {offsets = [0, 0], sizes = [8, 128], strides = [1, 1]} : vector<8x256xf32> to vector<8x128xf32>
    %c0_17 = arith.constant 0 : index
    %c0_18 = arith.constant 0 : index
    %24 = vector.load %arg8[%c0_17, %c0_18] : memref<8x128xf32, #tpu.memory_space<vmem>>, vector<8x128xf32>
    tpu.vector_store %arg8[%c0_17, %c0_18], %23 {strides = array<i32>} : memref<8x128xf32, #tpu.memory_space<vmem>>, vector<8x128xf32>,
    %25 = vector.extract_strided_slice %22 {offsets = [0, 128], sizes = [8, 128], strides = [1, 1]} : vector<8x256xf32> to vector<8x128xf32>
    %cst_19 = arith.constant -5.000000e+00 : f32
    %cst_20 = arith.constant 2.000000e+00 : f32
    %26 = vector.broadcast %cst_19 : f32 to vector<8x128xf32>
    %27 = arith.maximumf %26, %25 : vector<8x128xf32>
    %28 = vector.broadcast %cst_20 : f32 to vector<8x128xf32>
    %29 = arith.minimumf %28, %27 : vector<8x128xf32>
    %30 = math.exp %29 : vector<8x128xf32>
    %c0_21 = arith.constant 0 : index
    %c0_22 = arith.constant 0 : index
    %31 = vector.load %arg9[%c0_21, %c0_22] : memref<8x128xf32, #tpu.memory_space<vmem>>, vector<8x128xf32>
    tpu.vector_store %arg9[%c0_21, %c0_22], %30 {strides = array<i32>} : memref<8x128xf32, #tpu.memory_space<vmem>>, vector<8x128xf32>,
    return
  }
  func.func @transform_0(%arg0: i32) -> (i32, i32) {
    %c0_i32 = arith.constant 0 : i32
    %c0_i32_0 = arith.constant 0 : i32
    return %arg0, %c0_i32 : i32, i32
  }
  func.func @transform_1(%arg0: i32) -> (i32, i32) {
    %c0_i32 = arith.constant 0 : i32
    %c0_i32_0 = arith.constant 0 : i32
    %c0_i32_1 = arith.constant 0 : i32
    return %c0_i32, %c0_i32_0 : i32, i32
  }
  func.func @transform_2(%arg0: i32) -> (i32, i32) {
    %c0_i32 = arith.constant 0 : i32
    %c0_i32_0 = arith.constant 0 : i32
    %c0_i32_1 = arith.constant 0 : i32
    return %c0_i32, %c0_i32_0 : i32, i32
  }
  func.func @transform_3(%arg0: i32) -> (i32, i32) {
    %c0_i32 = arith.constant 0 : i32
    %c0_i32_0 = arith.constant 0 : i32
    %c0_i32_1 = arith.constant 0 : i32
    return %c0_i32, %c0_i32_0 : i32, i32
  }
  func.func @transform_4(%arg0: i32) -> (i32, i32) {
    %c0_i32 = arith.constant 0 : i32
    %c0_i32_0 = arith.constant 0 : i32
    %c0_i32_1 = arith.constant 0 : i32
    return %c0_i32, %c0_i32_0 : i32, i32
  }
  func.func @transform_5(%arg0: i32) -> (i32, i32) {
    %c0_i32 = arith.constant 0 : i32
    %c0_i32_0 = arith.constant 0 : i32
    %c0_i32_1 = arith.constant 0 : i32
    return %c0_i32, %c0_i32_0 : i32, i32
  }
  func.func @transform_6(%arg0: i32) -> (i32, i32) {
    %c0_i32 = arith.constant 0 : i32
    %c0_i32_0 = arith.constant 0 : i32
    %c0_i32_1 = arith.constant 0 : i32
    return %c0_i32, %c0_i32_0 : i32, i32
  }
  func.func @transform_7(%arg0: i32) -> (i32, i32) {
    %c0_i32 = arith.constant 0 : i32
    %c0_i32_0 = arith.constant 0 : i32
    return %arg0, %c0_i32 : i32, i32
  }
  func.func @transform_8(%arg0: i32) -> (i32, i32) {
    %c0_i32 = arith.constant 0 : i32
    %c0_i32_0 = arith.constant 0 : i32
    return %arg0, %c0_i32 : i32, i32
  }
}

</mosaic_0001>

<llo_original>
// kernel: actor_prob_forward.1
$region0: #{actor_prob_forward.1}
  #allocation0 [shape = 'u32[]', space=smem, size = 0x4, offset = 0x4, fixed_abs, tag = 'smem constant byte address 0x4 - core index']
  #allocation1 [shape = 'u32[144,128]{1,0:T(1,128)}', space=vmem, size = 0x12000, scoped, tag = 'internal scratch']
  %s0 = inlined_call_operand.hbm [shape: f32[8,16], index: 0, kind: input, shape index: {}]
  %s1 = inlined_call_operand.vmem [shape: bf16[16,128], index: 1, kind: input, shape index: {}]
  %s2 = inlined_call_operand.vmem [shape: f32[1,128], index: 2, kind: input, shape index: {}]
  %s3 = inlined_call_operand.hbm [shape: bf16[128,128], index: 3, kind: input, shape index: {}]
  %s4 = inlined_call_operand.vmem [shape: f32[1,128], index: 4, kind: input, shape index: {}]
  %s5 = inlined_call_operand.hbm [shape: bf16[128,256], index: 5, kind: input, shape index: {}]
  %s6 = inlined_call_operand.vmem [shape: f32[1,256], index: 6, kind: input, shape index: {}]
  %s7 = inlined_call_operand.vmem [shape: f32[8,128], index: 7, kind: output, shape index: {0}]
  %s8 = inlined_call_operand.vmem [shape: f32[8,128], index: 8, kind: output, shape index: {1}]
  %9 = xla_tuple %s7, %s8
  %s10 = sld [smem:[#allocation0]]
  $region58: #{actor_prob_forward.1} parent=0
    _
  %s12 = ssub.s32 1, %s10
  %s13 = scalar_select 0, %s12, %s10
  $region1: #{actor_prob_forward.1} parent=0
    #allocation2 [shape = 'u8[4096]{0}', space=vmem, size = 0x1000, scoped, tag = 'input window, operand 0, single buffered']
    #allocation3 [shape = 's32[1]{0}', space=sflag, size = 0x4, scoped, tag = 'scoped memory for actor_prob_forward.1']
    #allocation4 [shape = 'u8[32768]{0}', space=vmem, size = 0x8000, scoped, tag = 'input window, operand 3, single buffered']
    #allocation5 [shape = 's32[1]{0}', space=sflag, size = 0x4, scoped, tag = 'scoped memory for actor_prob_forward.1']
    #allocation6 [shape = 'u8[65536]{0}', space=vmem, size = 0x10000, scoped, tag = 'input window, operand 5, single buffered']
    %14 = vsyncpa [#allocation3], 0
    %15 = vsyncpa [#allocation5], 0
    // Predicated region
    $region2: #{actor_prob_forward.1} parent=1 // pred_check
      _
    $region3: #{actor_prob_forward.1} parent=1 // pred_check_branch
      %17 = sbr.rel (0) target = $region5
    $region4: #{actor_prob_forward.1} parent=1 // pred_region
      %s19 = ssub.s32 128, 128
      %20 = vsyncadd [#allocation3], %s19
      %s22 = sshll.u32 [#allocation2], 4
      %s23 = int_to_ptr.vmem [resolvable:$true] %s22
      %25 = dma.hbm_to_vmem [thread:$0]  %s0, 128, %s23, [#allocation3]
    $region5: #{actor_prob_forward.1} parent=1 // pred_fallthru
      _
    // Predicated region
    $region6: #{actor_prob_forward.1} parent=1 // pred_check
      _
    $region7: #{actor_prob_forward.1} parent=1 // pred_check_branch
      %27 = sbr.rel (0) target = $region9
    $region8: #{actor_prob_forward.1} parent=1 // pred_region
      _
    $region9: #{actor_prob_forward.1} parent=1 // pred_fallthru
      _
    // Predicated region
    $region10: #{actor_prob_forward.1} parent=1 // pred_check
      _
    $region11: #{actor_prob_forward.1} parent=1 // pred_check_branch
      %29 = sbr.rel (0) target = $region13
    $region12: #{actor_prob_forward.1} parent=1 // pred_region
      _
    $region13: #{actor_prob_forward.1} parent=1 // pred_fallthru
      _
    // Predicated region
    $region14: #{actor_prob_forward.1} parent=1 // pred_check
      _
    $region15: #{actor_prob_forward.1} parent=1 // pred_check_branch
      %31 = sbr.rel (0) target = $region17
    $region16: #{actor_prob_forward.1} parent=1 // pred_region
      %s33 = ssub.s32 1024, 1024
      %34 = vsyncadd [#allocation5], %s33
      %s35 = sshll.u32 [#allocation4], 4
      %s36 = int_to_ptr.vmem [resolvable:$true] %s35
      %41 = dma.hbm_to_vmem [thread:$0]  %s3, 1024, %s36, [#allocation5], 64, 64, 4
    $region17: #{actor_prob_forward.1} parent=1 // pred_fallthru
      _
    // Predicated region
    $region18: #{actor_prob_forward.1} parent=1 // pred_check
      _
    $region19: #{actor_prob_forward.1} parent=1 // pred_check_branch
      %43 = sbr.rel (0) target = $region21
    $region20: #{actor_prob_forward.1} parent=1 // pred_region
      _
    $region21: #{actor_prob_forward.1} parent=1 // pred_fallthru
      _
    // Predicated region
    $region22: #{actor_prob_forward.1} parent=1 // pred_check
      _
    $region23: #{actor_prob_forward.1} parent=1 // pred_check_branch
      %45 = sbr.rel (0) target = $region25
    $region24: #{actor_prob_forward.1} parent=1 // pred_region
      %s47 = ssub.s32 2048, 2048
      %48 = vsyncadd [#allocation5], %s47
      %s49 = sshll.u32 [#allocation6], 4
      %s50 = int_to_ptr.vmem [resolvable:$true] %s49
      %55 = dma.hbm_to_vmem [thread:$0]  %s5, 2048, %s50, [#allocation5], 128, 128, 8
    $region25: #{actor_prob_forward.1} parent=1 // pred_fallthru
      _
    // Predicated region
    $region26: #{actor_prob_forward.1} parent=1 // pred_check
      _
    $region27: #{actor_prob_forward.1} parent=1 // pred_check_branch
      %57 = sbr.rel (0) target = $region29
    $region28: #{actor_prob_forward.1} parent=1 // pred_region
      _
    $region29: #{actor_prob_forward.1} parent=1 // pred_fallthru
      _
    // Predicated region
    $region30: #{actor_prob_forward.1} parent=1 // pred_check
      _
    $region31: #{actor_prob_forward.1} parent=1 // pred_check_branch
      %59 = sbr.rel (0) target = $region33
    $region32: #{actor_prob_forward.1} parent=1 // pred_region
      %60 = dma.done [#allocation3], 128
    $region33: #{actor_prob_forward.1} parent=1 // pred_fallthru
      _
    // Predicated region
    $region34: #{actor_prob_forward.1} parent=1 // pred_check
      _
    $region35: #{actor_prob_forward.1} parent=1 // pred_check_branch
      %62 = sbr.rel (0) target = $region37
    $region36: #{actor_prob_forward.1} parent=1 // pred_region
      %63 = dma.done [#allocation5], 1024
    $region37: #{actor_prob_forward.1} parent=1 // pred_fallthru
      _
    // Predicated region
    $region38: #{actor_prob_forward.1} parent=1 // pred_check
      _
    $region39: #{actor_prob_forward.1} parent=1 // pred_check_branch
      %65 = sbr.rel (0) target = $region41
    $region40: #{actor_prob_forward.1} parent=1 // pred_region
      %66 = dma.done [#allocation5], 2048
    $region41: #{actor_prob_forward.1} parent=1 // pred_fallthru
      _
    %v68 = vld [vmem:[#allocation2] sm:$0xff]
    %v69 = vpack.c.bf16 %v68, %v68
    %v70 = vld [vmem:[%s1] sm:$0xf]
    %v71 = vld [vmem:[%s1 + $0x4] sm:$0xf]
    %v72 = vld [vmem:[%s2] sm:$0x1]
    %v74 = vlaneseq
    %v75 = vshrl.u32 %v74, 7
    %v76 = vsub.s32 0, %v75
    %v77 = vrot.slane %v72, %v76
    %v81 = vunpack.c.l.b16 %v70
    %v82 = vunpack.c.l.b16 %v71
    %v83 = vpack.c.b16 %v82, %v81
    %vm85 = vcmask 130048
    %v87 = vsel %vm85, %v69, 0
    %89 = vmatprep.subr.bf16.mxu0 0
    %90 = vmatpush1.bf16.msra.mxu0 %v83
    %91 = vmatprep.subr.bf16.mxu0 0
    %92 = vmatpush1.bf16.msra.mxu0 0
    %93 = vmatprep.subr.bf16.mxu0 0
    %94 = vmatpush1.bf16.msra.mxu0 0
    %95 = vmatprep.subr.bf16.mxu0 0
    %96 = vmatpush1.bf16.msra.mxu0 0
    %97 = vmatprep.subr.bf16.mxu0 0
    %98 = vmatpush1.bf16.msra.mxu0 0
    %99 = vmatprep.subr.bf16.mxu0 0
    %100 = vmatpush1.bf16.msra.mxu0 0
    %101 = vmatprep.subr.bf16.mxu0 0
    %102 = vmatpush1.bf16.msra.mxu0 0
    %103 = vmatprep.subr.bf16.mxu0 0
    %104 = vmatpush1.bf16.msra.mxu0 0
    %105 = vmatprep.subr.bf16.mxu0 0
    %106 = vmatpush1.bf16.msra.mxu0 0
    %107 = vmatprep.subr.bf16.mxu0 0
    %108 = vmatpush1.bf16.msra.mxu0 0
    %109 = vmatprep.subr.bf16.mxu0 0
    %110 = vmatpush1.bf16.msra.mxu0 0
    %111 = vmatprep.subr.bf16.mxu0 0
    %112 = vmatpush1.bf16.msra.mxu0 0
    %113 = vmatprep.subr.bf16.mxu0 0
    %114 = vmatpush1.bf16.msra.mxu0 0
    %115 = vmatprep.subr.bf16.mxu0 0
    %116 = vmatpush1.bf16.msra.mxu0 0
    %117 = vmatprep.subr.bf16.mxu0 0
    %118 = vmatpush1.bf16.msra.mxu0 0
    %119 = vmatprep.subr.bf16.mxu0 0
    %120 = vmatpush1.bf16.msra.mxu0 0
    %121 = vmatprep.mubr.bf16.mxu0 0
    %122 = vmatmul.mubr.bf16.gmra.mrb[0].mxu0 %v87
    %v123 = vpop.f32.mrb[0].mxu0
    %v124 = vadd.f32 %v77, %v123
    %v125 = vpop.f32.mrb[0].mxu0
    %v126 = vpop.f32.mrb[0].mxu0
    %v127 = vpop.f32.mrb[0].mxu0
    %128 = vdwg.mxu0
    %v129 = vmax.f32 %v124, 0.0
    %v130 = vpack.c.bf16 %v129, %v129
    %v131 = vld [vmem:[#allocation4] sm:$0xf]
    %v132 = vld [vmem:[#allocation4 + $0x4] sm:$0xf]
    %v133 = vld [vmem:[#allocation4 + $0x8] sm:$0xf]
    %v134 = vld [vmem:[#allocation4 + $0xc] sm:$0xf]
    %v135 = vld [vmem:[#allocation4 + $0x10] sm:$0xf]
    %v136 = vld [vmem:[#allocation4 + $0x14] sm:$0xf]
    %v137 = vld [vmem:[#allocation4 + $0x18] sm:$0xf]
    %v138 = vld [vmem:[#allocation4 + $0x1c] sm:$0xf]
    %v139 = vld [vmem:[#allocation4 + $0x20] sm:$0xf]
    %v140 = vld [vmem:[#allocation4 + $0x24] sm:$0xf]
    %v141 = vld [vmem:[#allocation4 + $0x28] sm:$0xf]
    %v142 = vld [vmem:[#allocation4 + $0x2c] sm:$0xf]
    %v143 = vld [vmem:[#allocation4 + $0x30] sm:$0xf]
    %v144 = vld [vmem:[#allocation4 + $0x34] sm:$0xf]
    %v145 = vld [vmem:[#allocation4 + $0x38] sm:$0xf]
    %v146 = vld [vmem:[#allocation4 + $0x3c] sm:$0xf]
    %v147 = vld [vmem:[%s4] sm:$0x1]
    %v149 = vlaneseq
    %v150 = vshrl.u32 %v149, 7
    %v151 = vsub.s32 0, %v150
    %v152 = vrot.slane %v147, %v151
    %v170 = vunpack.c.l.b16 %v131
    %v171 = vunpack.c.l.b16 %v132
    %v172 = vunpack.c.l.b16 %v133
    %v173 = vunpack.c.l.b16 %v134
    %v174 = vunpack.c.l.b16 %v135
    %v175 = vunpack.c.l.b16 %v136
    %v176 = vunpack.c.l.b16 %v137
    %v177 = vunpack.c.l.b16 %v138
    %v178 = vunpack.c.l.b16 %v139
    %v179 = vunpack.c.l.b16 %v140
    %v180 = vunpack.c.l.b16 %v141
    %v181 = vunpack.c.l.b16 %v142
    %v182 = vunpack.c.l.b16 %v143
    %v183 = vunpack.c.l.b16 %v144
    %v184 = vunpack.c.l.b16 %v145
    %v185 = vunpack.c.l.b16 %v146
    %v186 = vpack.c.b16 %v171, %v170
    %v187 = vpack.c.b16 %v173, %v172
    %v188 = vpack.c.b16 %v175, %v174
    %v189 = vpack.c.b16 %v177, %v176
    %v190 = vpack.c.b16 %v179, %v178
    %v191 = vpack.c.b16 %v181, %v180
    %v192 = vpack.c.b16 %v183, %v182
    %v193 = vpack.c.b16 %v185, %v184
    %202 = vmatprep.subr.bf16.mxu0 0
    %203 = vmatpush1.bf16.msra.mxu0 %v186
    %204 = vmatprep.subr.bf16.mxu0 0
    %205 = vmatpush1.bf16.msra.mxu0 %v187
    %206 = vmatprep.subr.bf16.mxu0 0
    %207 = vmatpush1.bf16.msra.mxu0 %v188
    %208 = vmatprep.subr.bf16.mxu0 0
    %209 = vmatpush1.bf16.msra.mxu0 %v189
    %210 = vmatprep.subr.bf16.mxu0 0
    %211 = vmatpush1.bf16.msra.mxu0 %v190
    %212 = vmatprep.subr.bf16.mxu0 0
    %213 = vmatpush1.bf16.msra.mxu0 %v191
    %214 = vmatprep.subr.bf16.mxu0 0
    %215 = vmatpush1.bf16.msra.mxu0 %v192
    %216 = vmatprep.subr.bf16.mxu0 0
    %217 = vmatpush1.bf16.msra.mxu0 %v193
    %218 = vmatprep.subr.bf16.mxu0 0
    %219 = vmatpush1.bf16.msra.mxu0 0
    %220 = vmatprep.subr.bf16.mxu0 0
    %221 = vmatpush1.bf16.msra.mxu0 0
    %222 = vmatprep.subr.bf16.mxu0 0
    %223 = vmatpush1.bf16.msra.mxu0 0
    %224 = vmatprep.subr.bf16.mxu0 0
    %225 = vmatpush1.bf16.msra.mxu0 0
    %226 = vmatprep.subr.bf16.mxu0 0
    %227 = vmatpush1.bf16.msra.mxu0 0
    %228 = vmatprep.subr.bf16.mxu0 0
    %229 = vmatpush1.bf16.msra.mxu0 0
    %230 = vmatprep.subr.bf16.mxu0 0
    %231 = vmatpush1.bf16.msra.mxu0 0
    %232 = vmatprep.subr.bf16.mxu0 0
    %233 = vmatpush1.bf16.msra.mxu0 0
    %234 = vmatprep.mubr.bf16.mxu0 0
    %235 = vmatmul.mubr.bf16.gmra.mrb[0].mxu0 %v130
    %v236 = vpop.f32.mrb[0].mxu0
    %v237 = vadd.f32 %v152, %v236
    %v238 = vpop.f32.mrb[0].mxu0
    %v239 = vpop.f32.mrb[0].mxu0
    %v240 = vpop.f32.mrb[0].mxu0
    %241 = vdwg.mxu0
    %v242 = vmax.f32 %v237, 0.0
    %v243 = vpack.c.bf16 %v242, %v242
    %v244 = vld [vmem:[#allocation6] sm:$0xff]
    %v245 = vld [vmem:[#allocation6 + $0x8] sm:$0xff]
    %v246 = vld [vmem:[#allocation6 + $0x10] sm:$0xff]
    %v247 = vld [vmem:[#allocation6 + $0x18] sm:$0xff]
    %v248 = vld [vmem:[#allocation6 + $0x20] sm:$0xff]
    %v249 = vld [vmem:[#allocation6 + $0x28] sm:$0xff]
    %v250 = vld [vmem:[#allocation6 + $0x30] sm:$0xff]
    %v251 = vld [vmem:[#allocation6 + $0x38] sm:$0xff]
    %v252 = vld [vmem:[#allocation6 + $0x40] sm:$0xff]
    %v253 = vld [vmem:[#allocation6 + $0x48] sm:$0xff]
    %v254 = vld [vmem:[#allocation6 + $0x50] sm:$0xff]
    %v255 = vld [vmem:[#allocation6 + $0x58] sm:$0xff]
    %v256 = vld [vmem:[#allocation6 + $0x60] sm:$0xff]
    %v257 = vld [vmem:[#allocation6 + $0x68] sm:$0xff]
    %v258 = vld [vmem:[#allocation6 + $0x70] sm:$0xff]
    %v259 = vld [vmem:[#allocation6 + $0x78] sm:$0xff]
    %v260 = vld [vmem:[%s6] sm:$0x3]
    %v262 = vlaneseq
    %v263 = vshrl.u32 %v262, 7
    %v264 = vsub.s32 0, %v263
    %v265 = vrot.slane %v260, %v264
    %v266 = vlaneseq
    %v267 = vshrl.u32 %v266, 7
    %v268 = vsub.s32 1, %v267
    %v269 = vrot.slane %v260, %v268
    %v288 = vunpack.c.l.b16 %v244
    %v289 = vunpack.c.h.b16 %v244
    %v290 = vunpack.c.l.b16 %v245
    %v291 = vunpack.c.h.b16 %v245
    %v292 = vunpack.c.l.b16 %v246
    %v293 = vunpack.c.h.b16 %v246
    %v294 = vunpack.c.l.b16 %v247
    %v295 = vunpack.c.h.b16 %v247
    %v296 = vunpack.c.l.b16 %v248
    %v297 = vunpack.c.h.b16 %v248
    %v298 = vunpack.c.l.b16 %v249
    %v299 = vunpack.c.h.b16 %v249
    %v300 = vunpack.c.l.b16 %v250
    %v301 = vunpack.c.h.b16 %v250
    %v302 = vunpack.c.l.b16 %v251
    %v303 = vunpack.c.h.b16 %v251
    %v304 = vunpack.c.l.b16 %v252
    %v305 = vunpack.c.h.b16 %v252
    %v306 = vunpack.c.l.b16 %v253
    %v307 = vunpack.c.h.b16 %v253
    %v308 = vunpack.c.l.b16 %v254
    %v309 = vunpack.c.h.b16 %v254
    %v310 = vunpack.c.l.b16 %v255
    %v311 = vunpack.c.h.b16 %v255
    %v312 = vunpack.c.l.b16 %v256
    %v313 = vunpack.c.h.b16 %v256
    %v314 = vunpack.c.l.b16 %v257
    %v315 = vunpack.c.h.b16 %v257
    %v316 = vunpack.c.l.b16 %v258
    %v317 = vunpack.c.h.b16 %v258
    %v318 = vunpack.c.l.b16 %v259
    %v319 = vunpack.c.h.b16 %v259
    %v320 = vpack.c.b16 %v290, %v288
    %v321 = vpack.c.b16 %v291, %v289
    %v322 = vpack.c.b16 %v294, %v292
    %v323 = vpack.c.b16 %v295, %v293
    %v324 = vpack.c.b16 %v298, %v296
    %v325 = vpack.c.b16 %v299, %v297
    %v326 = vpack.c.b16 %v302, %v300
    %v327 = vpack.c.b16 %v303, %v301
    %v328 = vpack.c.b16 %v306, %v304
    %v329 = vpack.c.b16 %v307, %v305
    %v330 = vpack.c.b16 %v310, %v308
    %v331 = vpack.c.b16 %v311, %v309
    %v332 = vpack.c.b16 %v314, %v312
    %v333 = vpack.c.b16 %v315, %v313
    %v334 = vpack.c.b16 %v318, %v316
    %v335 = vpack.c.b16 %v319, %v317
    %352 = vmatprep.subr.bf16.mxu0 %v321
    %353 = vmatpush1.bf16.msra.mxu0 %v320
    %354 = vmatprep.subr.bf16.mxu0 %v323
    %355 = vmatpush1.bf16.msra.mxu0 %v322
    %356 = vmatprep.subr.bf16.mxu0 %v325
    %357 = vmatpush1.bf16.msra.mxu0 %v324
    %358 = vmatprep.subr.bf16.mxu0 %v327
    %359 = vmatpush1.bf16.msra.mxu0 %v326
    %360 = vmatprep.subr.bf16.mxu0 %v329
    %361 = vmatpush1.bf16.msra.mxu0 %v328
    %362 = vmatprep.subr.bf16.mxu0 %v331
    %363 = vmatpush1.bf16.msra.mxu0 %v330
    %364 = vmatprep.subr.bf16.mxu0 %v333
    %365 = vmatpush1.bf16.msra.mxu0 %v332
    %366 = vmatprep.subr.bf16.mxu0 %v335
    %367 = vmatpush1.bf16.msra.mxu0 %v334
    %368 = vmatprep.subr.bf16.mxu0 0
    %369 = vmatpush1.bf16.msra.mxu0 0
    %370 = vmatprep.subr.bf16.mxu0 0
    %371 = vmatpush1.bf16.msra.mxu0 0
    %372 = vmatprep.subr.bf16.mxu0 0
    %373 = vmatpush1.bf16.msra.mxu0 0
    %374 = vmatprep.subr.bf16.mxu0 0
    %375 = vmatpush1.bf16.msra.mxu0 0
    %376 = vmatprep.subr.bf16.mxu0 0
    %377 = vmatpush1.bf16.msra.mxu0 0
    %378 = vmatprep.subr.bf16.mxu0 0
    %379 = vmatpush1.bf16.msra.mxu0 0
    %380 = vmatprep.subr.bf16.mxu0 0
    %381 = vmatpush1.bf16.msra.mxu0 0
    %382 = vmatprep.subr.bf16.mxu0 0
    %383 = vmatpush1.bf16.msra.mxu0 0
    %384 = vmatprep.mubr.bf16.mxu0 0
    %385 = vmatmul.mubr.bf16.gmra.mrb[0].mxu0 %v243
    %v386 = vpop.f32.mrb[0].mxu0
    %v387 = vadd.f32 %v265, %v386
    %v388 = vpop.f32.mrb[0].mxu0
    %v389 = vadd.f32 %v269, %v388
    %v390 = vpop.f32.mrb[0].mxu0
    %v391 = vpop.f32.mrb[0].mxu0
    %392 = vdwg.mxu0
    %393 = vst [vmem:[%s7] sm:$0xff] %v387
    %v394 = vmax.f32 %v389, -5.0
    %v395 = vmin.f32 %v394, 2.0
    %v396 = vmul.f32 %v395, 1.442695
    %v397 = vpow.pop %v396
    %398 = vst [vmem:[%s8] sm:$0xff] %v397
    // Predicated region
    $region42: #{actor_prob_forward.1} parent=1 // pred_check
      _
    $region43: #{actor_prob_forward.1} parent=1 // pred_check_branch
      %400 = sbr.rel (0) target = $region45
    $region44: #{actor_prob_forward.1} parent=1 // pred_region
      _
    $region45: #{actor_prob_forward.1} parent=1 // pred_fallthru
      _
    // Predicated region
    $region46: #{actor_prob_forward.1} parent=1 // pred_check
      _
    $region47: #{actor_prob_forward.1} parent=1 // pred_check_branch
      %402 = sbr.rel (0) target = $region49
    $region48: #{actor_prob_forward.1} parent=1 // pred_region
      _
    $region49: #{actor_prob_forward.1} parent=1 // pred_fallthru
      _
    // Predicated region
    $region50: #{actor_prob_forward.1} parent=1 // pred_check
      _
    $region51: #{actor_prob_forward.1} parent=1 // pred_check_branch
      %404 = sbr.rel (0) target = $region53
    $region52: #{actor_prob_forward.1} parent=1 // pred_region
      _
    $region53: #{actor_prob_forward.1} parent=1 // pred_fallthru
      _
    // Predicated region
    $region54: #{actor_prob_forward.1} parent=1 // pred_check
      _
    $region55: #{actor_prob_forward.1} parent=1 // pred_check_branch
      %406 = sbr.rel (0) target = $region57
    $region56: #{actor_prob_forward.1} parent=1 // pred_region
      _
    $region57: #{actor_prob_forward.1} parent=1 // pred_fallthru
      _
    %407 = vsyncpa [#allocation3], 1
    %408 = vsyncpa [#allocation5], 1

</llo_original>
